<compile_context>
chip_gen: v5e
topology: v5e:2x2
jax: 0.10.0
libtpu: 0.0.40
codegen_flags: <defaults>
</compile_context>

<pallas_src>
import numpy as np
import jax
import jax.numpy as jnp
from jax.experimental import pallas as pl
from jax.experimental.pallas import tpu as pltpu

WIDTH = 128  # every matmul dimension padded to one full lane tile


def _round_up(x, m):
    return (x + m - 1) // m * m


# ---------------------------------------------------------------------------
# Host-side (trace-time) parameter fusion
# ---------------------------------------------------------------------------
def _band_conv_weight(w, pad, lin, out_positions):
    """w: (K, Cin, Cout) conv taps -> banded (lin*Cin, len(pos)*Cout).

    Rows ordered (s, cin), columns ordered (t, cout):
      out[t, co] = sum_{s,ci} x[s, ci] * w[s - t + pad, ci, co]
    """
    K, cin, cout = w.shape
    rows = []
    for s in range(lin):
        cols = []
        for t in out_positions:
            k = s - t + pad
            cols.append(w[k] if 0 <= k < K else jnp.zeros((cin, cout), w.dtype))
        rows.append(jnp.concatenate(cols, axis=1))
    return jnp.concatenate(rows, axis=0)


def fuse_params(p, C, U, BL, NB, L, dtype=jnp.float32):
    """Fold BN(eval)+biases into 128x128 banded weights; return (4+2NB,128,128)."""
    CL, LU = C * L, L * U
    ONES_X, ONES_H = CL, LU            # constant-1 lane positions
    assert CL + 1 <= WIDTH and LU + 1 <= WIDTH
    assert 2 * C <= WIDTH and 3 * BL <= WIDTH

    def fold(w, b, scale, shift):
        # conv -> BN:  (x@W + b)*s + t  ==  x@(W*s) + (b*s + t)
        return w * scale, (b * scale + shift)[0]        # (K,Cin,Cout), (Cout,)

    def embed(band_w, bias_vec, ones_row, ones_col):
        # place banded block + bias row (+ ones-lane propagation) in a 128x128 tile
        r, c = band_w.shape
        W = jnp.zeros((WIDTH, WIDTH), jnp.float32)
        W = W.at[:r, :c].set(band_w)
        W = W.at[ones_row, :c].set(bias_vec)
        if ones_col is not None:
            W = W.at[ones_row, ones_col].set(1.0)        # re-emit the ones lane
        return W

    mats = []

    # _cnn_1 + _bn_1 : channel-major input slab -> position-major hidden slab
    w, b = fold(p["c1w"], p["c1b"], p["bn1s"], p["bn1t"])
    W1 = _band_conv_weight(w, 1, L, range(L))                       # rows (s,c)
    W1 = W1.reshape(L, C, LU).transpose(1, 0, 2).reshape(CL, LU)    # rows (c,s)
    mats.append(embed(W1, jnp.tile(b, L), ONES_X, ONES_H))

    # ResNet blocks (identity shortcut also carries the hidden ones-lane)
    for i in range(NB):
        w, b = fold(p["bw1"][i], p["bb1"][i], p["bs1"][i], p["bt1"][i])
        mats.append(embed(_band_conv_weight(w, 1, L, range(L)),
                          jnp.tile(b, L), ONES_H, ONES_H))
        w, b = fold(p["bw2"][i], p["bb2"][i], p["bs2"][i], p["bt2"][i])
        mats.append(embed(_band_conv_weight(w, 1, L, range(L)),
                          jnp.tile(b, L), ONES_H, None))   # residual restores lane

    # _cnn_2 (k7,p4): only output positions 0 and 1 are consumed downstream
    mats.append(embed(_band_conv_weight(p["c2w"], 4, L, (0, 1)),
                      jnp.tile(p["c2b"][0], 2), ONES_H, None))

    # Heads with interleaved output columns (col = bl*3 + head) -> plain
    # reshape in the wrapper, no transpose.
    def col_block(rows, weight, bias_row, bias):
        blk = jnp.zeros((WIDTH, BL), jnp.float32)
        if weight is not None:
            blk = blk.at[rows].set(weight)
        if bias is not None:
            blk = blk.at[bias_row].set(bias)
        return blk

    # top path: from y01 (lane layout t*C + c)
    wht = jnp.stack([col_block(jnp.arange(C), p["l1w"], None, None),
                     col_block(C + jnp.arange(C), p["l2w"], None, None),
                     jnp.zeros((WIDTH, BL), jnp.float32)], axis=-1)
    mats.append(jnp.pad(wht.reshape(WIDTH, 3 * BL),
                        ((0, 0), (0, WIDTH - 3 * BL))))

    # x path: head 2 reads inputs[:, c, 2] (slab row c*L + 2); ALL head biases
    # enter through the input ones lane.
    whx = jnp.stack([col_block(None, None, ONES_X, p["l1b"][0]),
                     col_block(None, None, ONES_X, p["l2b"][0]),
                     col_block(jnp.arange(C) * L + 2, p["l3w"],
                               ONES_X, p["l3b"][0])], axis=-1)
    mats.append(jnp.pad(whx.reshape(WIDTH, 3 * BL),
                        ((0, 0), (0, WIDTH - 3 * BL))))

    return jnp.stack(mats, axis=0).astype(dtype)     # (4 + 2*NB, 128, 128)


# ---------------------------------------------------------------------------
# Pallas kernel: whole forward pass, one 128x128 matmul per layer, no bias ops
# ---------------------------------------------------------------------------
def make_kernel(NB, mm_dtype):
    def kernel(x_ref, w_ref, o_ref):
        def mm(a, k):
            return jnp.dot(a.astype(mm_dtype), w_ref[k],
                           preferred_element_type=jnp.float32)

        x = x_ref[...]
        h = jnp.maximum(mm(x, 0), 0.0)                          # cnn_1+BN+ReLU
        for i in range(NB):                                     # ResNet blocks
            y = jnp.maximum(mm(h, 1 + 2 * i), 0.0)
            h = jnp.maximum(mm(y, 2 + 2 * i) + h, 0.0)
        y01 = mm(h, 1 + 2 * NB)                                 # cnn_2 pos 0/1
        # fused heads (+ all biases via ones lane); re-read x_ref (VMEM-resident)
        z = mm(y01, 2 + 2 * NB) + mm(x_ref[...], 3 + 2 * NB)
        o_ref[...] = jnp.tanh(z)                                # coder_actf=tanh

    return kernel


# ---------------------------------------------------------------------------
# Wrapper
# ---------------------------------------------------------------------------
def _choose_tiling(B, batch_tile):
    n_steps = pl.cdiv(B, batch_tile)
    if n_steps < 2 and B >= 16:
        n_steps = 2                       # >=2 grid steps -> both v7x TCs busy
    TB = _round_up(pl.cdiv(B, n_steps), 8)
    n_steps = pl.cdiv(B, TB)              # padding waste stays < TB
    return TB, n_steps


def resnet_coder_lat(inputs_ncw, w_stack, *, NB, BL, mm_dtype=jnp.float32,
                     batch_tile=512):
    """inputs_ncw: (B, C, L) float32 (PyTorch NCW). Returns (B, block_length, 3)."""
    B, C, L = inputs_ncw.shape
    CL = C * L

    TB, n_steps = _choose_tiling(B, batch_tile)
    B_pad = TB * n_steps

    # channel-major slab (pure reshape of NCW, no transpose), ones lane at CL
    x_slab = jnp.pad(inputs_ncw.reshape(B, CL).astype(jnp.float32),
                     ((0, B_pad - B), (0, WIDTH - CL)))
    x_slab = x_slab.at[:, CL].set(1.0).astype(mm_dtype)

    out = pl.pallas_call(
        make_kernel(NB, mm_dtype),
        out_shape=jax.ShapeDtypeStruct((B_pad, WIDTH), jnp.float32),
        grid=(n_steps,),
        in_specs=[pl.BlockSpec((TB, WIDTH), lambda i: (i, 0)),      # batch tile
                  pl.BlockSpec(memory_space=pltpu.MemorySpace.VMEM)],  # weights resident
        out_specs=pl.BlockSpec((TB, WIDTH), lambda i: (i, 0)),
        compiler_params=pltpu.CompilerParams(
            dimension_semantics=("parallel",)),
    )(x_slab, w_stack)

    # interleaved head columns -> plain reshape (== torch.cat([sys,p1,p2], dim=2))
    return out[:B, :3 * BL].reshape(B, BL, 3)


# ---------------------------------------------------------------------------
# Deterministic parameter initialization (synthetic, no checkpoint)
# ---------------------------------------------------------------------------
def init_params(key, C, U, BL, NB):
    ks = iter(jax.random.split(key, 64))

    def nrm(shape, scale):
        return scale * jax.random.normal(next(ks), shape, jnp.float32)

    def bn_fold(n):
        gamma = 1.0 + 0.1 * jax.random.normal(next(ks), (1, n), jnp.float32)
        beta = 0.1 * jax.random.normal(next(ks), (1, n), jnp.float32)
        mean = 0.1 * jax.random.normal(next(ks), (1, n), jnp.float32)
        var = 1.0 + 0.1 * jnp.abs(jax.random.normal(next(ks), (1, n), jnp.float32))
        scale = gamma / jnp.sqrt(var + 1e-5)
        shift = beta - mean * scale
        return scale, shift

    p = {}
    p["c1w"] = nrm((3, C, U), 0.2)          # (K, Cin, Cout) layout
    p["c1b"] = nrm((1, U), 0.1)
    p["bn1s"], p["bn1t"] = bn_fold(U)

    bw1, bb1, bs1, bt1 = [], [], [], []
    bw2, bb2, bs2, bt2 = [], [], [], []
    for _ in range(NB):
        bw1.append(nrm((3, U, U), 0.1)); bb1.append(nrm((1, U), 0.1))
        s, t = bn_fold(U); bs1.append(s); bt1.append(t)
        bw2.append(nrm((3, U, U), 0.1)); bb2.append(nrm((1, U), 0.1))
        s, t = bn_fold(U); bs2.append(s); bt2.append(t)
    p["bw1"], p["bb1"] = jnp.stack(bw1), jnp.stack(bb1)
    p["bs1"], p["bt1"] = jnp.stack(bs1), jnp.stack(bt1)
    p["bw2"], p["bb2"] = jnp.stack(bw2), jnp.stack(bb2)
    p["bs2"], p["bt2"] = jnp.stack(bs2), jnp.stack(bt2)

    p["c2w"] = nrm((7, U, C), 0.1)
    p["c2b"] = nrm((1, C), 0.1)

    # Linear weights stored pre-transposed: (in_features, out_features)
    p["l1w"] = nrm((C, BL), 0.2); p["l1b"] = nrm((1, BL), 0.1)
    p["l2w"] = nrm((C, BL), 0.2); p["l2b"] = nrm((1, BL), 0.1)
    p["l3w"] = nrm((C, BL), 0.2); p["l3b"] = nrm((1, BL), 0.1)
    return p


# ---------------------------------------------------------------------------
# Pure-JAX reference (unfused, per-tap math), used to check the kernel
# ---------------------------------------------------------------------------
def reference_forward(inputs_ncw, p, L):
    x = jnp.transpose(inputs_ncw, (2, 0, 1)).astype(jnp.float32)   # (L, B, C)

    def conv(xs, w, b, pad, positions):
        outs = []
        for t in positions:
            acc = jnp.zeros((xs.shape[1], w.shape[2]), jnp.float32) + b
            for k in range(w.shape[0]):
                s = t + k - pad
                if 0 <= s < xs.shape[0]:
                    acc = acc + xs[s] @ w[k]
            outs.append(acc)
        return jnp.stack(outs, 0)

    h = conv(x, p["c1w"], p["c1b"], 1, range(L))
    h = jnp.maximum(h * p["bn1s"] + p["bn1t"], 0.0)
    for i in range(p["bw1"].shape[0]):
        sc = h
        y = conv(h, p["bw1"][i], p["bb1"][i], 1, range(L))
        y = jnp.maximum(y * p["bs1"][i] + p["bt1"][i], 0.0)
        y = conv(y, p["bw2"][i], p["bb2"][i], 1, range(L))
        h = jnp.maximum(y * p["bs2"][i] + p["bt2"][i] + sc, 0.0)
    y01 = conv(h, p["c2w"], p["c2b"], 4, (0, 1))
    x_sys = jnp.tanh(y01[0] @ p["l1w"] + p["l1b"])
    x_p1 = jnp.tanh(y01[1] @ p["l2w"] + p["l2b"])
    x_p2 = jnp.tanh(x[2] @ p["l3w"] + p["l3b"])
    return jnp.stack([x_sys, x_p1, x_p2], axis=2)   # (B, BL, 3)


if __name__ == "__main__":
    # args: block_length=16, block_padding=2, redundancy=2, coder_units=32,
    #       coder_layers=2, rate='onethird', coder_actf='tanh',
    #       channel='continuous', continuous_coder=False (quantizer bypassed).
    B, BL, BP, RED = 8, 16, 2, 2
    C = BL + BP + RED            # 20  (Conv1d channel dim)
    U = 32                       # coder_units
    NB = 2                       # coder_layers
    L = 3                        # length axis = number of code streams ('onethird')

    key = jax.random.PRNGKey(0)
    k_in, k_p = jax.random.split(key)
    inputs = jax.random.normal(k_in, (B, C, L), jnp.float32)   # PyTorch NCW
    params = init_params(k_p, C, U, BL, NB)
    ref = reference_forward(inputs, params, L)

    # f32 matmul path (v5e default) — tight check
    w32 = fuse_params(params, C, U, BL, NB, L, dtype=jnp.float32)
    out32 = jax.block_until_ready(
        resnet_coder_lat(inputs, w32, NB=NB, BL=BL, mm_dtype=jnp.float32))
    assert out32.shape == (B, BL, 3)
    np.testing.assert_allclose(np.asarray(out32), np.asarray(ref),
                               atol=1e-3, rtol=1e-3)

    # bf16 matmul path (recommended on v6e/v7x: halves weight/activation
    # traffic, native MXU rate); elementwise stays f32 — loose check
    wbf = fuse_params(params, C, U, BL, NB, L, dtype=jnp.bfloat16)
    outbf = jax.block_until_ready(
        resnet_coder_lat(inputs, wbf, NB=NB, BL=BL, mm_dtype=jnp.bfloat16))
    assert outbf.shape == (B, BL, 3)
    np.testing.assert_allclose(np.asarray(outbf), np.asarray(ref),
                               atol=6e-2, rtol=6e-2)

    print("KERNEL_OK")
</pallas_src>

<mosaic_0001>
module attributes {stable_mosaic.version = 11 : i64} {
  func.func @kernel(%arg0: i32, %arg1: memref<8x128xf32, #tpu.memory_space<vmem>>, %arg2: memref<8x128x128xf32, #tpu.memory_space<vmem>>, %arg3: memref<8x128xf32, #tpu.memory_space<vmem>>) attributes {dimension_semantics = [#tpu.dimension_semantics<parallel>], iteration_bounds = array<i64: 1>, scalar_prefetch = 0 : i64, scratch_operands = 0 : i64, tpu.core_type = #tpu.core_type<tc>, window_params = [{transform_indices = @transform_0, window_bounds = array<i64: 8, 128>}, {pipeline_mode = #tpu.pipeline_mode<synchronous>, transform_indices = @transform_1, window_bounds = array<i64: 8, 128, 128>}, {transform_indices = @transform_2, window_bounds = array<i64: 8, 128>}]} {
    %c0 = arith.constant 0 : index
    %c0_0 = arith.constant 0 : index
    %0 = vector.load %arg1[%c0, %c0_0] : memref<8x128xf32, #tpu.memory_space<vmem>>, vector<8x128xf32>
    %c0_1 = arith.constant 0 : index
    %c0_2 = arith.constant 0 : index
    %c0_3 = arith.constant 0 : index
    %1 = vector.load %arg2[%c0_1, %c0_2, %c0_3] : memref<8x128x128xf32, #tpu.memory_space<vmem>>, vector<1x128x128xf32>
    %2 = vector.shape_cast %1 : vector<1x128x128xf32> to vector<128x128xf32>
    %cst = arith.constant dense<0.000000e+00> : vector<8x128xf32>
    %3 = tpu.matmul %0, %2, %cst {dimension_numbers = #tpu.dot_dimension_numbers<[1], [0], [0], [1], [0, 0, 1, 1], [], []>} : vector<8x128xf32>, vector<128x128xf32>, vector<8x128xf32> -> vector<8x128xf32>
    %cst_4 = arith.constant 0.000000e+00 : f32
    %4 = vector.broadcast %cst_4 : f32 to vector<8x128xf32>
    %5 = arith.maximumf %3, %4 : vector<8x128xf32>
    %c1 = arith.constant 1 : index
    %c0_5 = arith.constant 0 : index
    %c0_6 = arith.constant 0 : index
    %6 = vector.load %arg2[%c1, %c0_5, %c0_6] : memref<8x128x128xf32, #tpu.memory_space<vmem>>, vector<1x128x128xf32>
    %7 = vector.shape_cast %6 : vector<1x128x128xf32> to vector<128x128xf32>
    %cst_7 = arith.constant dense<0.000000e+00> : vector<8x128xf32>
    %8 = tpu.matmul %5, %7, %cst_7 {dimension_numbers = #tpu.dot_dimension_numbers<[1], [0], [0], [1], [0, 0, 1, 1], [], []>} : vector<8x128xf32>, vector<128x128xf32>, vector<8x128xf32> -> vector<8x128xf32>
    %cst_8 = arith.constant 0.000000e+00 : f32
    %9 = vector.broadcast %cst_8 : f32 to vector<8x128xf32>
    %10 = arith.maximumf %8, %9 : vector<8x128xf32>
    %c2 = arith.constant 2 : index
    %c0_9 = arith.constant 0 : index
    %c0_10 = arith.constant 0 : index
    %11 = vector.load %arg2[%c2, %c0_9, %c0_10] : memref<8x128x128xf32, #tpu.memory_space<vmem>>, vector<1x128x128xf32>
    %12 = vector.shape_cast %11 : vector<1x128x128xf32> to vector<128x128xf32>
    %cst_11 = arith.constant dense<0.000000e+00> : vector<8x128xf32>
    %13 = tpu.matmul %10, %12, %cst_11 {dimension_numbers = #tpu.dot_dimension_numbers<[1], [0], [0], [1], [0, 0, 1, 1], [], []>} : vector<8x128xf32>, vector<128x128xf32>, vector<8x128xf32> -> vector<8x128xf32>
    %14 = arith.addf %13, %5 : vector<8x128xf32>
    %cst_12 = arith.constant 0.000000e+00 : f32
    %15 = vector.broadcast %cst_12 : f32 to vector<8x128xf32>
    %16 = arith.maximumf %14, %15 : vector<8x128xf32>
    %c3 = arith.constant 3 : index
    %c0_13 = arith.constant 0 : index
    %c0_14 = arith.constant 0 : index
    %17 = vector.load %arg2[%c3, %c0_13, %c0_14] : memref<8x128x128xf32, #tpu.memory_space<vmem>>, vector<1x128x128xf32>
    %18 = vector.shape_cast %17 : vector<1x128x128xf32> to vector<128x128xf32>
    %cst_15 = arith.constant dense<0.000000e+00> : vector<8x128xf32>
    %19 = tpu.matmul %16, %18, %cst_15 {dimension_numbers = #tpu.dot_dimension_numbers<[1], [0], [0], [1], [0, 0, 1, 1], [], []>} : vector<8x128xf32>, vector<128x128xf32>, vector<8x128xf32> -> vector<8x128xf32>
    %cst_16 = arith.constant 0.000000e+00 : f32
    %20 = vector.broadcast %cst_16 : f32 to vector<8x128xf32>
    %21 = arith.maximumf %19, %20 : vector<8x128xf32>
    %c4 = arith.constant 4 : index
    %c0_17 = arith.constant 0 : index
    %c0_18 = arith.constant 0 : index
    %22 = vector.load %arg2[%c4, %c0_17, %c0_18] : memref<8x128x128xf32, #tpu.memory_space<vmem>>, vector<1x128x128xf32>
    %23 = vector.shape_cast %22 : vector<1x128x128xf32> to vector<128x128xf32>
    %cst_19 = arith.constant dense<0.000000e+00> : vector<8x128xf32>
    %24 = tpu.matmul %21, %23, %cst_19 {dimension_numbers = #tpu.dot_dimension_numbers<[1], [0], [0], [1], [0, 0, 1, 1], [], []>} : vector<8x128xf32>, vector<128x128xf32>, vector<8x128xf32> -> vector<8x128xf32>
    %25 = arith.addf %24, %16 : vector<8x128xf32>
    %cst_20 = arith.constant 0.000000e+00 : f32
    %26 = vector.broadcast %cst_20 : f32 to vector<8x128xf32>
    %27 = arith.maximumf %25, %26 : vector<8x128xf32>
    %c5 = arith.constant 5 : index
    %c0_21 = arith.constant 0 : index
    %c0_22 = arith.constant 0 : index
    %28 = vector.load %arg2[%c5, %c0_21, %c0_22] : memref<8x128x128xf32, #tpu.memory_space<vmem>>, vector<1x128x128xf32>
    %29 = vector.shape_cast %28 : vector<1x128x128xf32> to vector<128x128xf32>
    %cst_23 = arith.constant dense<0.000000e+00> : vector<8x128xf32>
    %30 = tpu.matmul %27, %29, %cst_23 {dimension_numbers = #tpu.dot_dimension_numbers<[1], [0], [0], [1], [0, 0, 1, 1], [], []>} : vector<8x128xf32>, vector<128x128xf32>, vector<8x128xf32> -> vector<8x128xf32>
    %c6 = arith.constant 6 : index
    %c0_24 = arith.constant 0 : index
    %c0_25 = arith.constant 0 : index
    %31 = vector.load %arg2[%c6, %c0_24, %c0_25] : memref<8x128x128xf32, #tpu.memory_space<vmem>>, vector<1x128x128xf32>
    %32 = vector.shape_cast %31 : vector<1x128x128xf32> to vector<128x128xf32>
    %cst_26 = arith.constant dense<0.000000e+00> : vector<8x128xf32>
    %33 = tpu.matmul %30, %32, %cst_26 {dimension_numbers = #tpu.dot_dimension_numbers<[1], [0], [0], [1], [0, 0, 1, 1], [], []>} : vector<8x128xf32>, vector<128x128xf32>, vector<8x128xf32> -> vector<8x128xf32>
    %c0_27 = arith.constant 0 : index
    %c0_28 = arith.constant 0 : index
    %34 = vector.load %arg1[%c0_27, %c0_28] : memref<8x128xf32, #tpu.memory_space<vmem>>, vector<8x128xf32>
    %c7 = arith.constant 7 : index
    %c0_29 = arith.constant 0 : index
    %c0_30 = arith.constant 0 : index
    %35 = vector.load %arg2[%c7, %c0_29, %c0_30] : memref<8x128x128xf32, #tpu.memory_space<vmem>>, vector<1x128x128xf32>
    %36 = vector.shape_cast %35 : vector<1x128x128xf32> to vector<128x128xf32>
    %cst_31 = arith.constant dense<0.000000e+00> : vector<8x128xf32>
    %37 = tpu.matmul %34, %36, %cst_31 {dimension_numbers = #tpu.dot_dimension_numbers<[1], [0], [0], [1], [0, 0, 1, 1], [], []>} : vector<8x128xf32>, vector<128x128xf32>, vector<8x128xf32> -> vector<8x128xf32>
    %38 = arith.addf %33, %37 : vector<8x128xf32>
    %39 = math.tanh %38 : vector<8x128xf32>
    %c0_32 = arith.constant 0 : index
    %c0_33 = arith.constant 0 : index
    %40 = vector.load %arg3[%c0_32, %c0_33] : memref<8x128xf32, #tpu.memory_space<vmem>>, vector<8x128xf32>
    tpu.vector_store %arg3[%c0_32, %c0_33], %39 {strides = array<i32>} : memref<8x128xf32, #tpu.memory_space<vmem>>, vector<8x128xf32>,
    return
  }
  func.func @transform_0(%arg0: i32) -> (i32, i32) {
    %c0_i32 = arith.constant 0 : i32
    %c0_i32_0 = arith.constant 0 : i32
    return %arg0, %c0_i32 : i32, i32
  }
  func.func @transform_1(%arg0: i32) -> (i32, i32, i32) {
    %c0_i32 = arith.constant 0 : i32
    %c0_i32_0 = arith.constant 0 : i32
    %c0_i32_1 = arith.constant 0 : i32
    %c0_i32_2 = arith.constant 0 : i32
    return %c0_i32, %c0_i32_0, %c0_i32_1 : i32, i32, i32
  }
  func.func @transform_2(%arg0: i32) -> (i32, i32) {
    %c0_i32 = arith.constant 0 : i32
    %c0_i32_0 = arith.constant 0 : i32
    return %arg0, %c0_i32 : i32, i32
  }
}

</mosaic_0001>

<llo_original>
// kernel: tpu_custom_call.1
$region0: #{tpu_custom_call.1}
  #allocation0 [shape = 'u32[]', space=smem, size = 0x4, offset = 0x4, fixed_abs, tag = 'smem constant byte address 0x4 - core index']
  #allocation1 [shape = 'u32[72,128]{1,0:T(1,128)}', space=vmem, size = 0x9000, scoped, tag = 'internal scratch']
  %s0 = inlined_call_operand.hbm [shape: f32[8,128], index: 0, kind: input, shape index: {}]
  %s1 = inlined_call_operand.hbm [shape: f32[8,128,128], index: 1, kind: input, shape index: {}]
  %s2 = inlined_call_operand.hbm [shape: f32[8,128], index: 2, kind: output, shape index: {}]
  %s3 = sld [smem:[#allocation0]]
  $region26: #{tpu_custom_call.1} parent=0
    _
  %s5 = ssub.s32 1, %s3
  %s6 = scalar_select 0, %s5, %s3
  $region1: #{tpu_custom_call.1} parent=0
    #allocation2 [shape = 'u8[4096]{0}', space=vmem, size = 0x1000, scoped, tag = 'input window, operand 0, single buffered']
    #allocation3 [shape = 's32[1]{0}', space=sflag, size = 0x4, scoped, tag = 'scoped memory for tpu_custom_call.1']
    #allocation4 [shape = 's32[1]{0}', space=sflag, size = 0x4, scoped, tag = 'scoped memory for tpu_custom_call.1']
    #allocation5 [shape = 'u8[524288]{0}', space=vmem, size = 0x80000, scoped, tag = 'input window, operand 1, single buffered']
    #allocation6 [shape = 's32[1]{0}', space=sflag, size = 0x4, scoped, tag = 'scoped memory for tpu_custom_call.1']
    #allocation7 [shape = 'u8[4096]{0}', space=vmem, size = 0x1000, scoped, tag = 'output window, operand 0, single buffered']
    %7 = vsyncpa [#allocation3], 0
    %8 = vsyncpa [#allocation6], 0
    %9 = vsyncpa [#allocation4], 0
    // Predicated region
    $region2: #{tpu_custom_call.1} parent=1 // pred_check
      _
    $region3: #{tpu_custom_call.1} parent=1 // pred_check_branch
      %11 = sbr.rel (0) target = $region5
    $region4: #{tpu_custom_call.1} parent=1 // pred_region
      %13 = vsyncadd [#allocation3], 0
      %s15 = sshll.u32 %s0, 4
      %s16 = int_to_ptr.hbm [resolvable:$true] %s15
      %s17 = sshll.u32 [#allocation2], 4
      %s18 = int_to_ptr.vmem [resolvable:$true] %s17
      %20 = dma.hbm_to_vmem [thread:$0]  %s16, 128, %s18, [#allocation3]
    $region5: #{tpu_custom_call.1} parent=1 // pred_fallthru
      _
    // Predicated region
    $region6: #{tpu_custom_call.1} parent=1 // pred_check
      _
    $region7: #{tpu_custom_call.1} parent=1 // pred_check_branch
      %22 = sbr.rel (0) target = $region9
    $region8: #{tpu_custom_call.1} parent=1 // pred_region
      %24 = vsyncadd [#allocation6], 0
      %s25 = sshll.u32 %s1, 4
      %s26 = int_to_ptr.hbm [resolvable:$true] %s25
      %s27 = sshll.u32 [#allocation5], 4
      %s28 = int_to_ptr.vmem [resolvable:$true] %s27
      %33 = dma.hbm_to_vmem [thread:$0]  %s26, 16384, %s28, [#allocation6], 128, 128, 8
    $region9: #{tpu_custom_call.1} parent=1 // pred_fallthru
      _
    // Predicated region
    $region10: #{tpu_custom_call.1} parent=1 // pred_check
      _
    $region11: #{tpu_custom_call.1} parent=1 // pred_check_branch
      %35 = sbr.rel (0) target = $region13
    $region12: #{tpu_custom_call.1} parent=1 // pred_region
      %37 = dma.done [#allocation3], 128
    $region13: #{tpu_custom_call.1} parent=1 // pred_fallthru
      _
    // Predicated region
    $region14: #{tpu_custom_call.1} parent=1 // pred_check
      _
    $region15: #{tpu_custom_call.1} parent=1 // pred_check_branch
      %39 = sbr.rel (0) target = $region17
    $region16: #{tpu_custom_call.1} parent=1 // pred_region
      %41 = dma.done [#allocation6], 16384
    $region17: #{tpu_custom_call.1} parent=1 // pred_fallthru
      _
    %v42 = vld [vmem:[#allocation2] sm:$0xff]
    %v43 = vld [vmem:[#allocation5] sm:$0xff]
    %v44 = vld [vmem:[#allocation5 + $0x8] sm:$0xff]
    %v45 = vld [vmem:[#allocation5 + $0x10] sm:$0xff]
    %v46 = vld [vmem:[#allocation5 + $0x18] sm:$0xff]
    %v47 = vld [vmem:[#allocation5 + $0x20] sm:$0xff]
    %v48 = vld [vmem:[#allocation5 + $0x28] sm:$0xff]
    %v49 = vld [vmem:[#allocation5 + $0x30] sm:$0xff]
    %v50 = vld [vmem:[#allocation5 + $0x38] sm:$0xff]
    %v51 = vld [vmem:[#allocation5 + $0x40] sm:$0xff]
    %v52 = vld [vmem:[#allocation5 + $0x48] sm:$0xff]
    %v53 = vld [vmem:[#allocation5 + $0x50] sm:$0xff]
    %v54 = vld [vmem:[#allocation5 + $0x58] sm:$0xff]
    %v55 = vld [vmem:[#allocation5 + $0x60] sm:$0xff]
    %v56 = vld [vmem:[#allocation5 + $0x68] sm:$0xff]
    %v57 = vld [vmem:[#allocation5 + $0x70] sm:$0xff]
    %v58 = vld [vmem:[#allocation5 + $0x78] sm:$0xff]
    %59 = vmatpush.msra.mxu0 %v58
    %60 = vmatpush.msra.mxu0 %v57
    %61 = vmatpush.msra.mxu0 %v56
    %62 = vmatpush.msra.mxu0 %v55
    %63 = vmatpush.msra.mxu0 %v54
    %64 = vmatpush.msra.mxu0 %v53
    %65 = vmatpush.msra.mxu0 %v52
    %66 = vmatpush.msra.mxu0 %v51
    %67 = vmatpush.msra.mxu0 %v50
    %68 = vmatpush.msra.mxu0 %v49
    %69 = vmatpush.msra.mxu0 %v48
    %70 = vmatpush.msra.mxu0 %v47
    %71 = vmatpush.msra.mxu0 %v46
    %72 = vmatpush.msra.mxu0 %v45
    %73 = vmatpush.msra.mxu0 %v44
    %74 = vmatpush.msra.mxu0 %v43
    %75 = vmatmul.f32.gmra.mxu0 %v42
    %v76 = vpop.f32.mrf.mxu0
    %v77 = vadd.f32 0.0, %v76
    %78 = vdwg.mxu0
    %v79 = vmax.f32 %v77, 0.0
    %s80 = scalar_lea.vmem [#allocation5], 128
    %v81 = vld [vmem:[%s80] sm:$0xff]
    %v82 = vld [vmem:[%s80 + $0x8] sm:$0xff]
    %v83 = vld [vmem:[%s80 + $0x10] sm:$0xff]
    %v84 = vld [vmem:[%s80 + $0x18] sm:$0xff]
    %v85 = vld [vmem:[%s80 + $0x20] sm:$0xff]
    %v86 = vld [vmem:[%s80 + $0x28] sm:$0xff]
    %v87 = vld [vmem:[%s80 + $0x30] sm:$0xff]
    %v88 = vld [vmem:[%s80 + $0x38] sm:$0xff]
    %v89 = vld [vmem:[%s80 + $0x40] sm:$0xff]
    %v90 = vld [vmem:[%s80 + $0x48] sm:$0xff]
    %v91 = vld [vmem:[%s80 + $0x50] sm:$0xff]
    %v92 = vld [vmem:[%s80 + $0x58] sm:$0xff]
    %v93 = vld [vmem:[%s80 + $0x60] sm:$0xff]
    %v94 = vld [vmem:[%s80 + $0x68] sm:$0xff]
    %v95 = vld [vmem:[%s80 + $0x70] sm:$0xff]
    %v96 = vld [vmem:[%s80 + $0x78] sm:$0xff]
    %97 = vmatpush.msra.mxu0 %v96
    %98 = vmatpush.msra.mxu0 %v95
    %99 = vmatpush.msra.mxu0 %v94
    %100 = vmatpush.msra.mxu0 %v93
    %101 = vmatpush.msra.mxu0 %v92
    %102 = vmatpush.msra.mxu0 %v91
    %103 = vmatpush.msra.mxu0 %v90
    %104 = vmatpush.msra.mxu0 %v89
    %105 = vmatpush.msra.mxu0 %v88
    %106 = vmatpush.msra.mxu0 %v87
    %107 = vmatpush.msra.mxu0 %v86
    %108 = vmatpush.msra.mxu0 %v85
    %109 = vmatpush.msra.mxu0 %v84
    %110 = vmatpush.msra.mxu0 %v83
    %111 = vmatpush.msra.mxu0 %v82
    %112 = vmatpush.msra.mxu0 %v81
    %113 = vmatmul.f32.gmra.mxu0 %v79
    %v114 = vpop.f32.mrf.mxu0
    %v115 = vadd.f32 0.0, %v114
    %116 = vdwg.mxu0
    %v117 = vmax.f32 %v115, 0.0
    %s118 = scalar_lea.vmem [#allocation5], 256
    %v119 = vld [vmem:[%s118] sm:$0xff]
    %v120 = vld [vmem:[%s118 + $0x8] sm:$0xff]
    %v121 = vld [vmem:[%s118 + $0x10] sm:$0xff]
    %v122 = vld [vmem:[%s118 + $0x18] sm:$0xff]
    %v123 = vld [vmem:[%s118 + $0x20] sm:$0xff]
    %v124 = vld [vmem:[%s118 + $0x28] sm:$0xff]
    %v125 = vld [vmem:[%s118 + $0x30] sm:$0xff]
    %v126 = vld [vmem:[%s118 + $0x38] sm:$0xff]
    %v127 = vld [vmem:[%s118 + $0x40] sm:$0xff]
    %v128 = vld [vmem:[%s118 + $0x48] sm:$0xff]
    %v129 = vld [vmem:[%s118 + $0x50] sm:$0xff]
    %v130 = vld [vmem:[%s118 + $0x58] sm:$0xff]
    %v131 = vld [vmem:[%s118 + $0x60] sm:$0xff]
    %v132 = vld [vmem:[%s118 + $0x68] sm:$0xff]
    %v133 = vld [vmem:[%s118 + $0x70] sm:$0xff]
    %v134 = vld [vmem:[%s118 + $0x78] sm:$0xff]
    %135 = vmatpush.msra.mxu0 %v134
    %136 = vmatpush.msra.mxu0 %v133
    %137 = vmatpush.msra.mxu0 %v132
    %138 = vmatpush.msra.mxu0 %v131
    %139 = vmatpush.msra.mxu0 %v130
    %140 = vmatpush.msra.mxu0 %v129
    %141 = vmatpush.msra.mxu0 %v128
    %142 = vmatpush.msra.mxu0 %v127
    %143 = vmatpush.msra.mxu0 %v126
    %144 = vmatpush.msra.mxu0 %v125
    %145 = vmatpush.msra.mxu0 %v124
    %146 = vmatpush.msra.mxu0 %v123
    %147 = vmatpush.msra.mxu0 %v122
    %148 = vmatpush.msra.mxu0 %v121
    %149 = vmatpush.msra.mxu0 %v120
    %150 = vmatpush.msra.mxu0 %v119
    %151 = vmatmul.f32.gmra.mxu0 %v117
    %v152 = vpop.f32.mrf.mxu0
    %v153 = vadd.f32 %v79, %v152
    %154 = vdwg.mxu0
    %v155 = vmax.f32 %v153, 0.0
    %s156 = scalar_lea.vmem [#allocation5], 384
    %v157 = vld [vmem:[%s156] sm:$0xff]
    %v158 = vld [vmem:[%s156 + $0x8] sm:$0xff]
    %v159 = vld [vmem:[%s156 + $0x10] sm:$0xff]
    %v160 = vld [vmem:[%s156 + $0x18] sm:$0xff]
    %v161 = vld [vmem:[%s156 + $0x20] sm:$0xff]
    %v162 = vld [vmem:[%s156 + $0x28] sm:$0xff]
    %v163 = vld [vmem:[%s156 + $0x30] sm:$0xff]
    %v164 = vld [vmem:[%s156 + $0x38] sm:$0xff]
    %v165 = vld [vmem:[%s156 + $0x40] sm:$0xff]
    %v166 = vld [vmem:[%s156 + $0x48] sm:$0xff]
    %v167 = vld [vmem:[%s156 + $0x50] sm:$0xff]
    %v168 = vld [vmem:[%s156 + $0x58] sm:$0xff]
    %v169 = vld [vmem:[%s156 + $0x60] sm:$0xff]
    %v170 = vld [vmem:[%s156 + $0x68] sm:$0xff]
    %v171 = vld [vmem:[%s156 + $0x70] sm:$0xff]
    %v172 = vld [vmem:[%s156 + $0x78] sm:$0xff]
    %173 = vmatpush.msra.mxu0 %v172
    %174 = vmatpush.msra.mxu0 %v171
    %175 = vmatpush.msra.mxu0 %v170
    %176 = vmatpush.msra.mxu0 %v169
    %177 = vmatpush.msra.mxu0 %v168
    %178 = vmatpush.msra.mxu0 %v167
    %179 = vmatpush.msra.mxu0 %v166
    %180 = vmatpush.msra.mxu0 %v165
    %181 = vmatpush.msra.mxu0 %v164
    %182 = vmatpush.msra.mxu0 %v163
    %183 = vmatpush.msra.mxu0 %v162
    %184 = vmatpush.msra.mxu0 %v161
    %185 = vmatpush.msra.mxu0 %v160
    %186 = vmatpush.msra.mxu0 %v159
    %187 = vmatpush.msra.mxu0 %v158
    %188 = vmatpush.msra.mxu0 %v157
    %189 = vmatmul.f32.gmra.mxu0 %v155
    %v190 = vpop.f32.mrf.mxu0
    %v191 = vadd.f32 0.0, %v190
    %192 = vdwg.mxu0
    %v193 = vmax.f32 %v191, 0.0
    %s194 = scalar_lea.vmem [#allocation5], 512
    %v195 = vld [vmem:[%s194] sm:$0xff]
    %v196 = vld [vmem:[%s194 + $0x8] sm:$0xff]
    %v197 = vld [vmem:[%s194 + $0x10] sm:$0xff]
    %v198 = vld [vmem:[%s194 + $0x18] sm:$0xff]
    %v199 = vld [vmem:[%s194 + $0x20] sm:$0xff]
    %v200 = vld [vmem:[%s194 + $0x28] sm:$0xff]
    %v201 = vld [vmem:[%s194 + $0x30] sm:$0xff]
    %v202 = vld [vmem:[%s194 + $0x38] sm:$0xff]
    %v203 = vld [vmem:[%s194 + $0x40] sm:$0xff]
    %v204 = vld [vmem:[%s194 + $0x48] sm:$0xff]
    %v205 = vld [vmem:[%s194 + $0x50] sm:$0xff]
    %v206 = vld [vmem:[%s194 + $0x58] sm:$0xff]
    %v207 = vld [vmem:[%s194 + $0x60] sm:$0xff]
    %v208 = vld [vmem:[%s194 + $0x68] sm:$0xff]
    %v209 = vld [vmem:[%s194 + $0x70] sm:$0xff]
    %v210 = vld [vmem:[%s194 + $0x78] sm:$0xff]
    %211 = vmatpush.msra.mxu0 %v210
    %212 = vmatpush.msra.mxu0 %v209
    %213 = vmatpush.msra.mxu0 %v208
    %214 = vmatpush.msra.mxu0 %v207
    %215 = vmatpush.msra.mxu0 %v206
    %216 = vmatpush.msra.mxu0 %v205
    %217 = vmatpush.msra.mxu0 %v204
    %218 = vmatpush.msra.mxu0 %v203
    %219 = vmatpush.msra.mxu0 %v202
    %220 = vmatpush.msra.mxu0 %v201
    %221 = vmatpush.msra.mxu0 %v200
    %222 = vmatpush.msra.mxu0 %v199
    %223 = vmatpush.msra.mxu0 %v198
    %224 = vmatpush.msra.mxu0 %v197
    %225 = vmatpush.msra.mxu0 %v196
    %226 = vmatpush.msra.mxu0 %v195
    %227 = vmatmul.f32.gmra.mxu0 %v193
    %v228 = vpop.f32.mrf.mxu0
    %v229 = vadd.f32 %v155, %v228
    %230 = vdwg.mxu0
    %v231 = vmax.f32 %v229, 0.0
    %s232 = scalar_lea.vmem [#allocation5], 640
    %v233 = vld [vmem:[%s232] sm:$0xff]
    %v234 = vld [vmem:[%s232 + $0x8] sm:$0xff]
    %v235 = vld [vmem:[%s232 + $0x10] sm:$0xff]
    %v236 = vld [vmem:[%s232 + $0x18] sm:$0xff]
    %v237 = vld [vmem:[%s232 + $0x20] sm:$0xff]
    %v238 = vld [vmem:[%s232 + $0x28] sm:$0xff]
    %v239 = vld [vmem:[%s232 + $0x30] sm:$0xff]
    %v240 = vld [vmem:[%s232 + $0x38] sm:$0xff]
    %v241 = vld [vmem:[%s232 + $0x40] sm:$0xff]
    %v242 = vld [vmem:[%s232 + $0x48] sm:$0xff]
    %v243 = vld [vmem:[%s232 + $0x50] sm:$0xff]
    %v244 = vld [vmem:[%s232 + $0x58] sm:$0xff]
    %v245 = vld [vmem:[%s232 + $0x60] sm:$0xff]
    %v246 = vld [vmem:[%s232 + $0x68] sm:$0xff]
    %v247 = vld [vmem:[%s232 + $0x70] sm:$0xff]
    %v248 = vld [vmem:[%s232 + $0x78] sm:$0xff]
    %249 = vmatpush.msra.mxu0 %v248
    %250 = vmatpush.msra.mxu0 %v247
    %251 = vmatpush.msra.mxu0 %v246
    %252 = vmatpush.msra.mxu0 %v245
    %253 = vmatpush.msra.mxu0 %v244
    %254 = vmatpush.msra.mxu0 %v243
    %255 = vmatpush.msra.mxu0 %v242
    %256 = vmatpush.msra.mxu0 %v241
    %257 = vmatpush.msra.mxu0 %v240
    %258 = vmatpush.msra.mxu0 %v239
    %259 = vmatpush.msra.mxu0 %v238
    %260 = vmatpush.msra.mxu0 %v237
    %261 = vmatpush.msra.mxu0 %v236
    %262 = vmatpush.msra.mxu0 %v235
    %263 = vmatpush.msra.mxu0 %v234
    %264 = vmatpush.msra.mxu0 %v233
    %265 = vmatmul.f32.gmra.mxu0 %v231
    %v266 = vpop.f32.mrf.mxu0
    %v267 = vadd.f32 0.0, %v266
    %268 = vdwg.mxu0
    %s269 = scalar_lea.vmem [#allocation5], 768
    %v270 = vld [vmem:[%s269] sm:$0xff]
    %v271 = vld [vmem:[%s269 + $0x8] sm:$0xff]
    %v272 = vld [vmem:[%s269 + $0x10] sm:$0xff]
    %v273 = vld [vmem:[%s269 + $0x18] sm:$0xff]
    %v274 = vld [vmem:[%s269 + $0x20] sm:$0xff]
    %v275 = vld [vmem:[%s269 + $0x28] sm:$0xff]
    %v276 = vld [vmem:[%s269 + $0x30] sm:$0xff]
    %v277 = vld [vmem:[%s269 + $0x38] sm:$0xff]
    %v278 = vld [vmem:[%s269 + $0x40] sm:$0xff]
    %v279 = vld [vmem:[%s269 + $0x48] sm:$0xff]
    %v280 = vld [vmem:[%s269 + $0x50] sm:$0xff]
    %v281 = vld [vmem:[%s269 + $0x58] sm:$0xff]
    %v282 = vld [vmem:[%s269 + $0x60] sm:$0xff]
    %v283 = vld [vmem:[%s269 + $0x68] sm:$0xff]
    %v284 = vld [vmem:[%s269 + $0x70] sm:$0xff]
    %v285 = vld [vmem:[%s269 + $0x78] sm:$0xff]
    %s286 = scalar_lea.vmem [#allocation5], 896
    %v287 = vld [vmem:[%s286] sm:$0xff]
    %v288 = vld [vmem:[%s286 + $0x8] sm:$0xff]
    %v289 = vld [vmem:[%s286 + $0x10] sm:$0xff]
    %v290 = vld [vmem:[%s286 + $0x18] sm:$0xff]
    %v291 = vld [vmem:[%s286 + $0x20] sm:$0xff]
    %v292 = vld [vmem:[%s286 + $0x28] sm:$0xff]
    %v293 = vld [vmem:[%s286 + $0x30] sm:$0xff]
    %v294 = vld [vmem:[%s286 + $0x38] sm:$0xff]
    %v295 = vld [vmem:[%s286 + $0x40] sm:$0xff]
    %v296 = vld [vmem:[%s286 + $0x48] sm:$0xff]
    %v297 = vld [vmem:[%s286 + $0x50] sm:$0xff]
    %v298 = vld [vmem:[%s286 + $0x58] sm:$0xff]
    %v299 = vld [vmem:[%s286 + $0x60] sm:$0xff]
    %v300 = vld [vmem:[%s286 + $0x68] sm:$0xff]
    %v301 = vld [vmem:[%s286 + $0x70] sm:$0xff]
    %v302 = vld [vmem:[%s286 + $0x78] sm:$0xff]
    %303 = vmatpush.msra.mxu0 %v302
    %304 = vmatpush.msra.mxu0 %v301
    %305 = vmatpush.msra.mxu0 %v300
    %306 = vmatpush.msra.mxu0 %v299
    %307 = vmatpush.msra.mxu0 %v298
    %308 = vmatpush.msra.mxu0 %v297
    %309 = vmatpush.msra.mxu0 %v296
    %310 = vmatpush.msra.mxu0 %v295
    %311 = vmatpush.msra.mxu0 %v294
    %312 = vmatpush.msra.mxu0 %v293
    %313 = vmatpush.msra.mxu0 %v292
    %314 = vmatpush.msra.mxu0 %v291
    %315 = vmatpush.msra.mxu0 %v290
    %316 = vmatpush.msra.mxu0 %v289
    %317 = vmatpush.msra.mxu0 %v288
    %318 = vmatpush.msra.mxu0 %v287
    %319 = vmatmul.f32.gmra.mxu0 %v42
    %v320 = vpop.f32.mrf.mxu0
    %v321 = vadd.f32 0.0, %v320
    %322 = vdwg.mxu0
    %323 = vmatpush.msra.mxu0 %v285
    %324 = vmatpush.msra.mxu0 %v284
    %325 = vmatpush.msra.mxu0 %v283
    %326 = vmatpush.msra.mxu0 %v282
    %327 = vmatpush.msra.mxu0 %v281
    %328 = vmatpush.msra.mxu0 %v280
    %329 = vmatpush.msra.mxu0 %v279
    %330 = vmatpush.msra.mxu0 %v278
    %331 = vmatpush.msra.mxu0 %v277
    %332 = vmatpush.msra.mxu0 %v276
    %333 = vmatpush.msra.mxu0 %v275
    %334 = vmatpush.msra.mxu0 %v274
    %335 = vmatpush.msra.mxu0 %v273
    %336 = vmatpush.msra.mxu0 %v272
    %337 = vmatpush.msra.mxu0 %v271
    %338 = vmatpush.msra.mxu0 %v270
    %339 = vmatmul.f32.gmra.mxu0 %v267
    %v340 = vpop.f32.mrf.mxu0
    %v341 = vadd.f32 %v321, %v340
    %342 = vdwg.mxu0
    %v343 = vtanh.pop %v341
    %344 = vst [vmem:[#allocation7] sm:$0xff] %v343
    // Predicated region
    $region18: #{tpu_custom_call.1} parent=1 // pred_check
      _
    $region19: #{tpu_custom_call.1} parent=1 // pred_check_branch
      %346 = sbr.rel (0) target = $region21
    $region20: #{tpu_custom_call.1} parent=1 // pred_region
      %348 = vsyncadd [#allocation4], 0
      %s350 = sshll.u32 [#allocation7], 4
      %s351 = int_to_ptr.vmem [resolvable:$true] %s350
      %s352 = sshll.u32 %s2, 4
      %s353 = int_to_ptr.hbm [resolvable:$true] %s352
      %355 = dma.vmem_to_hbm [thread:$0]  %s351, 128, %s353, [#allocation4]
    $region21: #{tpu_custom_call.1} parent=1 // pred_fallthru
      _
    // Predicated region
    $region22: #{tpu_custom_call.1} parent=1 // pred_check
      _
    $region23: #{tpu_custom_call.1} parent=1 // pred_check_branch
      %357 = sbr.rel (0) target = $region25
    $region24: #{tpu_custom_call.1} parent=1 // pred_region
      %359 = dma.done [#allocation4], 128
    $region25: #{tpu_custom_call.1} parent=1 // pred_fallthru
      _
    %360 = vsyncpa [#allocation3], 1
    %361 = vsyncpa [#allocation6], 1
    %362 = vsyncpa [#allocation4], 1

</llo_original>
